<compile_context>
chip_gen: v5e
topology: v5e:2x2
jax: 0.10.0
libtpu: 0.0.40
codegen_flags: <defaults>
</compile_context>

<pallas_src>
import functools

import jax
import jax.numpy as jnp
from jax import lax
from jax.experimental import pallas as pl
from jax.experimental.pallas import tpu as pltpu


def _cab_kernel(x_ref, k1_ref, k2_ref, ca1_ref, ca2_ref, sprev_ref, snext_ref,
                pool_ref, sel_ref, slope_ref, out_ref, *, wc, gemm_dtype):
    """Single invocation over the whole batch slab.

    x_ref    : (M, WC)      f32 input slab, M = N*H rows, lanes = (w, c)
    k1_ref   : (3*WC, WC)   banded conv1 weight (dy-major; W zero-pad folded in)
    k2_ref   : (3*WC, WC)   banded conv2 weight
    ca1_ref  : (WC, 128)    CA squeeze weight, avg-pool 1/(H*W) folded in, Cr zero-padded
    ca2_ref  : (128, WC)    CA excite weight, channel-broadcast folded in, Cr zero-padded
    sprev_ref: (M, M)       row shift-down select matrix (image-boundary rows zeroed)
    snext_ref: (M, M)       row shift-up   select matrix (image-boundary rows zeroed)
    pool_ref : (NP, M)      per-image row-sum matrix (rows >= N are zero)
    sel_ref  : (M, NP)      f32 per-image broadcast-back matrix
    slope_ref: (1,)         PReLU slope (SMEM scalar)
    out_ref  : (M, WC)      f32 output slab
    """
    x = x_ref[...]
    slope = slope_ref[0]
    s_prev = sprev_ref[...]
    s_next = snext_ref[...]

    def mxdot(a, b):
        # MXU GEMM with f32 accumulation; operands cast to gemm_dtype
        # (f32 for exactness, bf16 for the v6e/v7x fast path).
        return jnp.dot(a.astype(gemm_dtype), b.astype(gemm_dtype),
                       preferred_element_type=jnp.float32)

    def conv3x3(v, k_ref):
        # dy = -1 / 0 / +1 taps: shifted rows (boundary rows pre-zeroed inside
        # the shift matrices) hit the matching 128-aligned slice of the banded
        # weight; three accumulating dots, no lane-concat temporary.
        v_m1 = mxdot(s_prev, v)                              # v[m-1], zero at image-top rows
        v_p1 = mxdot(s_next, v)                              # v[m+1], zero at image-bottom rows
        y = mxdot(v_m1, k_ref[pl.ds(0, wc), :])
        y += mxdot(v, k_ref[pl.ds(wc, wc), :])
        y += mxdot(v_p1, k_ref[pl.ds(2 * wc, wc), :])
        return y

    # ---- body: conv -> PReLU -> conv (elementwise math kept in f32) ----
    h1 = conv3x3(x, k1_ref)
    h1 = jnp.where(h1 > 0, h1, slope * h1)                   # PReLU (single slope)
    r = conv3x3(h1, k2_ref)                                  # (M, WC)

    # ---- CALayer: per-image avg-pool + 1x1 -> ReLU -> 1x1 -> sigmoid -> scale ----
    pooled = mxdot(pool_ref[...], r)                         # (NP, WC) per-image row sums
    z = jnp.maximum(mxdot(pooled, ca1_ref[...]), 0.0)        # (NP, 128)
    scale = jax.nn.sigmoid(mxdot(z, ca2_ref[...]))           # (NP, WC)
    scale_rows = jnp.dot(sel_ref[...], scale,
                         preferred_element_type=jnp.float32)  # (M, WC), exact f32 select

    # ---- residual add, lane-dense store ----
    out_ref[...] = (r * scale_rows + x).astype(out_ref.dtype)


def _banded_conv_weight(w_hwio, W):
    """(3,3,Cin,Cout) HWIO conv weight -> (3*W*Cin, W*Cout) banded matrix.

    K[(dy*W + s)*Cin + ci, w*Cout + co] = w[dy, s - w + 1, ci, co] if |s - w| <= 1 else 0,
    so Y = sum_dy X_shift_dy @ K[dy-block] implements the 3x3 SAME (zero-padded)
    conv when X is the (rows, W*Cin) channels-last slab.
    """
    kh, kw, cin, cout = w_hwio.shape
    ws = jnp.arange(W)
    # band[s, w, dx] = 1  iff  s == w + dx - kw//2
    band = (ws[:, None, None] ==
            ws[None, :, None] + jnp.arange(kw)[None, None, :] - kw // 2)
    band = band.astype(w_hwio.dtype)
    k5 = jnp.einsum('dxio,swx->dsiwo', w_hwio, band)          # (kh, W, cin, W, cout)
    return k5.reshape(kh * W * cin, W * cout)


def cab_forward(x_nchw, w1, w2, wd1, wd2, slope, *, gemm_dtype=jnp.float32):
    """CAB forward.  x_nchw: (N, C, H, W) float32 -> (N, C, H, W) float32."""
    N, C, H, W = x_nchw.shape
    WC = W * C
    M = N * H
    Cr = wd1.shape[1]
    CAP = 128                                    # CA reduce dim padded to a full lane width
    NP = max(8, ((N + 7) // 8) * 8)              # pooled rows padded to a sublane multiple

    # NCHW -> (N*H, W*C): batch folded into the GEMM M dim, (w, c) on the lane axis.
    x2 = jnp.transpose(x_nchw, (0, 2, 3, 1)).reshape(M, WC).astype(jnp.float32)

    k1 = _banded_conv_weight(w1, W).astype(gemm_dtype)        # (3*WC, WC)
    k2 = _banded_conv_weight(w2, W).astype(gemm_dtype)

    # CA weights: avg-pool / channel-broadcast folded in, Cr zero-padded to CAP lanes.
    ca1 = jnp.zeros((WC, CAP), jnp.float32).at[:, :Cr].set(
        jnp.tile(wd1, (W, 1)) / float(H * W)).astype(gemm_dtype)
    ca2 = jnp.zeros((CAP, WC), jnp.float32).at[:Cr, :].set(
        jnp.tile(wd2, (1, W))).astype(gemm_dtype)

    # Constant row-shift / pool / broadcast matrices (built once, DMA'd once).
    m = jnp.arange(M)
    s_prev = ((m[:, None] == m[None, :] + 1) &
              ((m % H) != 0)[:, None]).astype(gemm_dtype)      # (M, M): v[m-1], top row zeroed
    s_next = ((m[:, None] + 1 == m[None, :]) &
              ((m % H) != (H - 1))[:, None]).astype(gemm_dtype)  # (M, M): v[m+1], bottom row zeroed
    pool_mat = (jnp.arange(NP)[:, None] == (m // H)[None, :]).astype(gemm_dtype)  # (NP, M)
    sel_mat = ((m // H)[:, None] == jnp.arange(NP)[None, :]).astype(jnp.float32)  # (M, NP)

    slope_arr = jnp.full((1,), slope, jnp.float32)

    itemsize = jnp.dtype(gemm_dtype).itemsize
    flops = (2 * (2 * M * (3 * WC) * WC)         # two banded 3x3 conv GEMMs
             + 4 * (2 * M * M * WC)              # dy row-shift selects
             + 2 * (2 * NP * WC * CAP)           # CA squeeze / excite
             + 2 * (2 * NP * M * WC))            # pool + broadcast-back
    bytes_acc = (2 * M * WC * 4
                 + (2 * 3 * WC * WC + WC * CAP + CAP * WC
                    + 2 * M * M + NP * M) * itemsize
                 + M * NP * 4 + 4)
    cost = pl.CostEstimate(flops=flops, transcendentals=NP * WC,
                           bytes_accessed=bytes_acc)

    out = pl.pallas_call(
        functools.partial(_cab_kernel, wc=WC, gemm_dtype=gemm_dtype),
        out_shape=jax.ShapeDtypeStruct((M, WC), jnp.float32),
        grid_spec=pltpu.PrefetchScalarGridSpec(
            num_scalar_prefetch=0,
            grid=(1,),                           # single step: whole batch in one GEMM slab
            in_specs=[
                pl.BlockSpec((M, WC), lambda i: (0, 0)),
                pl.BlockSpec((3 * WC, WC), lambda i: (0, 0)),
                pl.BlockSpec((3 * WC, WC), lambda i: (0, 0)),
                pl.BlockSpec((WC, CAP), lambda i: (0, 0)),
                pl.BlockSpec((CAP, WC), lambda i: (0, 0)),
                pl.BlockSpec((M, M), lambda i: (0, 0)),
                pl.BlockSpec((M, M), lambda i: (0, 0)),
                pl.BlockSpec((NP, M), lambda i: (0, 0)),
                pl.BlockSpec((M, NP), lambda i: (0, 0)),
                pl.BlockSpec(memory_space=pltpu.MemorySpace.SMEM),
            ],
            out_specs=pl.BlockSpec((M, WC), lambda i: (0, 0)),
        ),
        compiler_params=pltpu.CompilerParams(
            dimension_semantics=("arbitrary",),
            vmem_limit_bytes=32 * 1024 * 1024),
        cost_estimate=cost,
    )(x2, k1, k2, ca1, ca2, s_prev, s_next, pool_mat, sel_mat, slope_arr)

    out = out.reshape(N, H, W, C)
    return jnp.transpose(out, (0, 3, 1, 2))      # back to NCHW


def cab_reference(x_nchw, w1, w2, wd1, wd2, slope):
    """Pure-JAX reference mirroring the PyTorch CAB forward."""
    x = jnp.transpose(x_nchw, (0, 2, 3, 1))
    dn = ('NHWC', 'HWIO', 'NHWC')
    h = lax.conv_general_dilated(x, w1, (1, 1), 'SAME', dimension_numbers=dn)
    h = jnp.where(h > 0, h, slope * h)                       # PReLU
    r = lax.conv_general_dilated(h, w2, (1, 1), 'SAME', dimension_numbers=dn)
    pooled = jnp.mean(r, axis=(1, 2), keepdims=True)         # (N,1,1,C)
    y = jnp.maximum(jnp.einsum('nijc,cd->nijd', pooled, wd1), 0.0)
    y = jax.nn.sigmoid(jnp.einsum('nijd,dc->nijc', y, wd2))
    out = r * y + x
    return jnp.transpose(out, (0, 3, 1, 2))


if __name__ == "__main__":
    # n_feat=8, kernel_size=3, reduction=4, bias=False, act=PReLU(), no_use_ca=False
    N, C, H, W = 2, 8, 16, 16
    reduction = 4
    Cr = C // reduction

    key = jax.random.PRNGKey(0)
    k0, k1w, k2w, k3, k4 = jax.random.split(key, 5)
    x = jax.random.normal(k0, (N, C, H, W), jnp.float32)
    w1 = jax.random.normal(k1w, (3, 3, C, C), jnp.float32) * 0.1
    w2 = jax.random.normal(k2w, (3, 3, C, C), jnp.float32) * 0.1
    wd1 = jax.random.normal(k3, (C, Cr), jnp.float32) * 0.1     # 1x1 squeeze, (Cin, Cr)
    wd2 = jax.random.normal(k4, (Cr, C), jnp.float32) * 0.1     # 1x1 excite,  (Cr, Cout)
    slope = jnp.float32(0.25)                                   # nn.PReLU() default init

    ref = cab_reference(x, w1, w2, wd1, wd2, slope)

    # f32 MXU path: exact enough to hold the 2e-3 tolerance on any chip.
    cab_f32 = jax.jit(functools.partial(cab_forward, gemm_dtype=jnp.float32))
    out = jax.block_until_ready(cab_f32(x, w1, w2, wd1, wd2, slope))
    assert out.shape == (N, C, H, W)
    assert jnp.allclose(out, ref, atol=2e-3, rtol=2e-3), "Pallas CAB (f32) mismatch vs reference"

    # bf16 MXU operands with f32 accumulation (v6e/v7x fast path); loose check.
    cab_bf16 = jax.jit(functools.partial(cab_forward, gemm_dtype=jnp.bfloat16))
    out_bf16 = jax.block_until_ready(cab_bf16(x, w1, w2, wd1, wd2, slope))
    assert jnp.allclose(out_bf16, ref, atol=5e-2, rtol=5e-2), "Pallas CAB (bf16) mismatch vs reference"

    print("KERNEL_OK")
</pallas_src>

<mosaic_0001>
module attributes {stable_mosaic.version = 11 : i64} {
  func.func @_cab_kernel(%arg0: i32, %arg1: memref<32x128xf32, #tpu.memory_space<vmem>>, %arg2: memref<384x128xf32, #tpu.memory_space<vmem>>, %arg3: memref<384x128xf32, #tpu.memory_space<vmem>>, %arg4: memref<128x128xf32, #tpu.memory_space<vmem>>, %arg5: memref<128x128xf32, #tpu.memory_space<vmem>>, %arg6: memref<32x32xf32, #tpu.memory_space<vmem>>, %arg7: memref<32x32xf32, #tpu.memory_space<vmem>>, %arg8: memref<8x32xf32, #tpu.memory_space<vmem>>, %arg9: memref<32x8xf32, #tpu.memory_space<vmem>>, %arg10: memref<1xf32, #tpu.memory_space<smem>>, %arg11: memref<32x128xf32, #tpu.memory_space<vmem>>) attributes {dimension_semantics = [#tpu.dimension_semantics<arbitrary>], iteration_bounds = array<i64: 1>, scalar_prefetch = 0 : i64, scratch_operands = 0 : i64, tpu.core_type = #tpu.core_type<tc>, window_params = [{pipeline_mode = #tpu.pipeline_mode<synchronous>, transform_indices = @transform_0, window_bounds = array<i64: 32, 128>}, {pipeline_mode = #tpu.pipeline_mode<synchronous>, transform_indices = @transform_1, window_bounds = array<i64: 384, 128>}, {pipeline_mode = #tpu.pipeline_mode<synchronous>, transform_indices = @transform_2, window_bounds = array<i64: 384, 128>}, {pipeline_mode = #tpu.pipeline_mode<synchronous>, transform_indices = @transform_3, window_bounds = array<i64: 128, 128>}, {pipeline_mode = #tpu.pipeline_mode<synchronous>, transform_indices = @transform_4, window_bounds = array<i64: 128, 128>}, {pipeline_mode = #tpu.pipeline_mode<synchronous>, transform_indices = @transform_5, window_bounds = array<i64: 32, 32>}, {pipeline_mode = #tpu.pipeline_mode<synchronous>, transform_indices = @transform_6, window_bounds = array<i64: 32, 32>}, {pipeline_mode = #tpu.pipeline_mode<synchronous>, transform_indices = @transform_7, window_bounds = array<i64: 8, 32>}, {pipeline_mode = #tpu.pipeline_mode<synchronous>, transform_indices = @transform_8, window_bounds = array<i64: 32, 8>}, {transform_indices = @transform_9, window_bounds = array<i64: 1>}, {pipeline_mode = #tpu.pipeline_mode<synchronous>, transform_indices = @transform_10, window_bounds = array<i64: 32, 128>}]} {
    %c0 = arith.constant 0 : index
    %c0_0 = arith.constant 0 : index
    %0 = vector.load %arg1[%c0, %c0_0] : memref<32x128xf32, #tpu.memory_space<vmem>>, vector<32x128xf32>
    %c0_1 = arith.constant 0 : index
    %1 = memref.load %arg10[%c0_1] : memref<1xf32, #tpu.memory_space<smem>>
    %c0_2 = arith.constant 0 : index
    %c0_3 = arith.constant 0 : index
    %2 = vector.load %arg6[%c0_2, %c0_3] : memref<32x32xf32, #tpu.memory_space<vmem>>, vector<32x32xf32>
    %c0_4 = arith.constant 0 : index
    %c0_5 = arith.constant 0 : index
    %3 = vector.load %arg7[%c0_4, %c0_5] : memref<32x32xf32, #tpu.memory_space<vmem>>, vector<32x32xf32>
    %cst = arith.constant dense<0.000000e+00> : vector<32x128xf32>
    %4 = tpu.matmul %2, %0, %cst {dimension_numbers = #tpu.dot_dimension_numbers<[1], [0], [0], [1], [0, 0, 1, 1], [], []>} : vector<32x32xf32>, vector<32x128xf32>, vector<32x128xf32> -> vector<32x128xf32>
    %cst_6 = arith.constant dense<0.000000e+00> : vector<32x128xf32>
    %5 = tpu.matmul %3, %0, %cst_6 {dimension_numbers = #tpu.dot_dimension_numbers<[1], [0], [0], [1], [0, 0, 1, 1], [], []>} : vector<32x32xf32>, vector<32x128xf32>, vector<32x128xf32> -> vector<32x128xf32>
    %c0_7 = arith.constant 0 : index
    %c0_8 = arith.constant 0 : index
    %6 = vector.load %arg2[%c0_7, %c0_8] : memref<384x128xf32, #tpu.memory_space<vmem>>, vector<128x128xf32>
    %cst_9 = arith.constant dense<0.000000e+00> : vector<32x128xf32>
    %7 = tpu.matmul %4, %6, %cst_9 {dimension_numbers = #tpu.dot_dimension_numbers<[1], [0], [0], [1], [0, 0, 1, 1], [], []>} : vector<32x128xf32>, vector<128x128xf32>, vector<32x128xf32> -> vector<32x128xf32>
    %c128 = arith.constant 128 : index
    %c0_10 = arith.constant 0 : index
    %8 = vector.load %arg2[%c128, %c0_10] : memref<384x128xf32, #tpu.memory_space<vmem>>, vector<128x128xf32>
    %cst_11 = arith.constant dense<0.000000e+00> : vector<32x128xf32>
    %9 = tpu.matmul %0, %8, %cst_11 {dimension_numbers = #tpu.dot_dimension_numbers<[1], [0], [0], [1], [0, 0, 1, 1], [], []>} : vector<32x128xf32>, vector<128x128xf32>, vector<32x128xf32> -> vector<32x128xf32>
    %10 = arith.addf %7, %9 : vector<32x128xf32>
    %c256 = arith.constant 256 : index
    %c0_12 = arith.constant 0 : index
    %11 = vector.load %arg2[%c256, %c0_12] : memref<384x128xf32, #tpu.memory_space<vmem>>, vector<128x128xf32>
    %cst_13 = arith.constant dense<0.000000e+00> : vector<32x128xf32>
    %12 = tpu.matmul %5, %11, %cst_13 {dimension_numbers = #tpu.dot_dimension_numbers<[1], [0], [0], [1], [0, 0, 1, 1], [], []>} : vector<32x128xf32>, vector<128x128xf32>, vector<32x128xf32> -> vector<32x128xf32>
    %13 = arith.addf %10, %12 : vector<32x128xf32>
    %cst_14 = arith.constant 0.000000e+00 : f32
    %14 = vector.broadcast %cst_14 : f32 to vector<32x128xf32>
    %15 = arith.cmpf ogt, %13, %14 : vector<32x128xf32>
    %16 = vector.broadcast %1 : f32 to vector<32x128xf32>
    %17 = arith.mulf %16, %13 : vector<32x128xf32>
    %18 = arith.select %15, %13, %17 : vector<32x128xi1>, vector<32x128xf32>
    %cst_15 = arith.constant dense<0.000000e+00> : vector<32x128xf32>
    %19 = tpu.matmul %2, %18, %cst_15 {dimension_numbers = #tpu.dot_dimension_numbers<[1], [0], [0], [1], [0, 0, 1, 1], [], []>} : vector<32x32xf32>, vector<32x128xf32>, vector<32x128xf32> -> vector<32x128xf32>
    %cst_16 = arith.constant dense<0.000000e+00> : vector<32x128xf32>
    %20 = tpu.matmul %3, %18, %cst_16 {dimension_numbers = #tpu.dot_dimension_numbers<[1], [0], [0], [1], [0, 0, 1, 1], [], []>} : vector<32x32xf32>, vector<32x128xf32>, vector<32x128xf32> -> vector<32x128xf32>
    %c0_17 = arith.constant 0 : index
    %c0_18 = arith.constant 0 : index
    %21 = vector.load %arg3[%c0_17, %c0_18] : memref<384x128xf32, #tpu.memory_space<vmem>>, vector<128x128xf32>
    %cst_19 = arith.constant dense<0.000000e+00> : vector<32x128xf32>
    %22 = tpu.matmul %19, %21, %cst_19 {dimension_numbers = #tpu.dot_dimension_numbers<[1], [0], [0], [1], [0, 0, 1, 1], [], []>} : vector<32x128xf32>, vector<128x128xf32>, vector<32x128xf32> -> vector<32x128xf32>
    %c128_20 = arith.constant 128 : index
    %c0_21 = arith.constant 0 : index
    %23 = vector.load %arg3[%c128_20, %c0_21] : memref<384x128xf32, #tpu.memory_space<vmem>>, vector<128x128xf32>
    %cst_22 = arith.constant dense<0.000000e+00> : vector<32x128xf32>
    %24 = tpu.matmul %18, %23, %cst_22 {dimension_numbers = #tpu.dot_dimension_numbers<[1], [0], [0], [1], [0, 0, 1, 1], [], []>} : vector<32x128xf32>, vector<128x128xf32>, vector<32x128xf32> -> vector<32x128xf32>
    %25 = arith.addf %22, %24 : vector<32x128xf32>
    %c256_23 = arith.constant 256 : index
    %c0_24 = arith.constant 0 : index
    %26 = vector.load %arg3[%c256_23, %c0_24] : memref<384x128xf32, #tpu.memory_space<vmem>>, vector<128x128xf32>
    %cst_25 = arith.constant dense<0.000000e+00> : vector<32x128xf32>
    %27 = tpu.matmul %20, %26, %cst_25 {dimension_numbers = #tpu.dot_dimension_numbers<[1], [0], [0], [1], [0, 0, 1, 1], [], []>} : vector<32x128xf32>, vector<128x128xf32>, vector<32x128xf32> -> vector<32x128xf32>
    %28 = arith.addf %25, %27 : vector<32x128xf32>
    %c0_26 = arith.constant 0 : index
    %c0_27 = arith.constant 0 : index
    %29 = vector.load %arg8[%c0_26, %c0_27] : memref<8x32xf32, #tpu.memory_space<vmem>>, vector<8x32xf32>
    %cst_28 = arith.constant dense<0.000000e+00> : vector<8x128xf32>
    %30 = tpu.matmul %29, %28, %cst_28 {dimension_numbers = #tpu.dot_dimension_numbers<[1], [0], [0], [1], [0, 0, 1, 1], [], []>} : vector<8x32xf32>, vector<32x128xf32>, vector<8x128xf32> -> vector<8x128xf32>
    %c0_29 = arith.constant 0 : index
    %c0_30 = arith.constant 0 : index
    %31 = vector.load %arg4[%c0_29, %c0_30] : memref<128x128xf32, #tpu.memory_space<vmem>>, vector<128x128xf32>
    %cst_31 = arith.constant dense<0.000000e+00> : vector<8x128xf32>
    %32 = tpu.matmul %30, %31, %cst_31 {dimension_numbers = #tpu.dot_dimension_numbers<[1], [0], [0], [1], [0, 0, 1, 1], [], []>} : vector<8x128xf32>, vector<128x128xf32>, vector<8x128xf32> -> vector<8x128xf32>
    %cst_32 = arith.constant 0.000000e+00 : f32
    %33 = vector.broadcast %cst_32 : f32 to vector<8x128xf32>
    %34 = arith.maximumf %32, %33 : vector<8x128xf32>
    %c0_33 = arith.constant 0 : index
    %c0_34 = arith.constant 0 : index
    %35 = vector.load %arg5[%c0_33, %c0_34] : memref<128x128xf32, #tpu.memory_space<vmem>>, vector<128x128xf32>
    %cst_35 = arith.constant dense<0.000000e+00> : vector<8x128xf32>
    %36 = tpu.matmul %34, %35, %cst_35 {dimension_numbers = #tpu.dot_dimension_numbers<[1], [0], [0], [1], [0, 0, 1, 1], [], []>} : vector<8x128xf32>, vector<128x128xf32>, vector<8x128xf32> -> vector<8x128xf32>
    %37 = arith.negf %36 : vector<8x128xf32>
    %38 = math.exp %37 : vector<8x128xf32>
    %cst_36 = arith.constant 1.000000e+00 : f32
    %39 = vector.broadcast %cst_36 : f32 to vector<8x128xf32>
    %40 = arith.addf %39, %38 : vector<8x128xf32>
    %41 = arith.divf %39, %40 : vector<8x128xf32>
    %c0_37 = arith.constant 0 : index
    %c0_38 = arith.constant 0 : index
    %42 = vector.load %arg9[%c0_37, %c0_38] : memref<32x8xf32, #tpu.memory_space<vmem>>, vector<32x8xf32>
    %cst_39 = arith.constant dense<0.000000e+00> : vector<32x128xf32>
    %43 = tpu.matmul %42, %41, %cst_39 {dimension_numbers = #tpu.dot_dimension_numbers<[1], [0], [0], [1], [0, 0, 1, 1], [], []>} : vector<32x8xf32>, vector<8x128xf32>, vector<32x128xf32> -> vector<32x128xf32>
    %44 = arith.mulf %28, %43 : vector<32x128xf32>
    %45 = arith.addf %44, %0 : vector<32x128xf32>
    %c0_40 = arith.constant 0 : index
    %c0_41 = arith.constant 0 : index
    %46 = vector.load %arg11[%c0_40, %c0_41] : memref<32x128xf32, #tpu.memory_space<vmem>>, vector<32x128xf32>
    tpu.vector_store %arg11[%c0_40, %c0_41], %45 {strides = array<i32>} : memref<32x128xf32, #tpu.memory_space<vmem>>, vector<32x128xf32>,
    return
  }
  func.func @transform_0(%arg0: i32) -> (i32, i32) {
    %c0_i32 = arith.constant 0 : i32
    %c0_i32_0 = arith.constant 0 : i32
    %c0_i32_1 = arith.constant 0 : i32
    return %c0_i32, %c0_i32_0 : i32, i32
  }
  func.func @transform_1(%arg0: i32) -> (i32, i32) {
    %c0_i32 = arith.constant 0 : i32
    %c0_i32_0 = arith.constant 0 : i32
    %c0_i32_1 = arith.constant 0 : i32
    return %c0_i32, %c0_i32_0 : i32, i32
  }
  func.func @transform_2(%arg0: i32) -> (i32, i32) {
    %c0_i32 = arith.constant 0 : i32
    %c0_i32_0 = arith.constant 0 : i32
    %c0_i32_1 = arith.constant 0 : i32
    return %c0_i32, %c0_i32_0 : i32, i32
  }
  func.func @transform_3(%arg0: i32) -> (i32, i32) {
    %c0_i32 = arith.constant 0 : i32
    %c0_i32_0 = arith.constant 0 : i32
    %c0_i32_1 = arith.constant 0 : i32
    return %c0_i32, %c0_i32_0 : i32, i32
  }
  func.func @transform_4(%arg0: i32) -> (i32, i32) {
    %c0_i32 = arith.constant 0 : i32
    %c0_i32_0 = arith.constant 0 : i32
    %c0_i32_1 = arith.constant 0 : i32
    return %c0_i32, %c0_i32_0 : i32, i32
  }
  func.func @transform_5(%arg0: i32) -> (i32, i32) {
    %c0_i32 = arith.constant 0 : i32
    %c0_i32_0 = arith.constant 0 : i32
    %c0_i32_1 = arith.constant 0 : i32
    return %c0_i32, %c0_i32_0 : i32, i32
  }
  func.func @transform_6(%arg0: i32) -> (i32, i32) {
    %c0_i32 = arith.constant 0 : i32
    %c0_i32_0 = arith.constant 0 : i32
    %c0_i32_1 = arith.constant 0 : i32
    return %c0_i32, %c0_i32_0 : i32, i32
  }
  func.func @transform_7(%arg0: i32) -> (i32, i32) {
    %c0_i32 = arith.constant 0 : i32
    %c0_i32_0 = arith.constant 0 : i32
    %c0_i32_1 = arith.constant 0 : i32
    return %c0_i32, %c0_i32_0 : i32, i32
  }
  func.func @transform_8(%arg0: i32) -> (i32, i32) {
    %c0_i32 = arith.constant 0 : i32
    %c0_i32_0 = arith.constant 0 : i32
    %c0_i32_1 = arith.constant 0 : i32
    return %c0_i32, %c0_i32_0 : i32, i32
  }
  func.func @transform_9(%arg0: i32) -> i32 {
    %c0_i32 = arith.constant 0 : i32
    %c0_i32_0 = arith.constant 0 : i32
    return %c0_i32 : i32
  }
  func.func @transform_10(%arg0: i32) -> (i32, i32) {
    %c0_i32 = arith.constant 0 : i32
    %c0_i32_0 = arith.constant 0 : i32
    %c0_i32_1 = arith.constant 0 : i32
    return %c0_i32, %c0_i32_0 : i32, i32
  }
}

</mosaic_0001>

<llo_original>
// kernel: cab_forward.1
$region0: #{cab_forward.1}
  #allocation0 [shape = 'u32[]', space=smem, size = 0x4, offset = 0x4, fixed_abs, tag = 'smem constant byte address 0x4 - core index']
  #allocation1 [shape = 'u32[72,128]{1,0:T(1,128)}', space=vmem, size = 0x9000, scoped, tag = 'internal scratch']
  #allocation2 [shape = 'f32[1]{0:T(128)S(6)}', space=smem, size = 0x200, scoped, tag = 'scoped memory for cab_forward.1']
  %s0 = inlined_call_operand.vmem [shape: f32[32,128], index: 0, kind: input, shape index: {}]
  %s1 = inlined_call_operand.vmem [shape: f32[384,128], index: 1, kind: input, shape index: {}]
  %s2 = inlined_call_operand.vmem [shape: f32[384,128], index: 2, kind: input, shape index: {}]
  %s3 = inlined_call_operand.vmem [shape: f32[128,128], index: 3, kind: input, shape index: {}]
  %s4 = inlined_call_operand.vmem [shape: f32[128,128], index: 4, kind: input, shape index: {}]
  %s5 = inlined_call_operand.vmem [shape: f32[32,32], index: 5, kind: input, shape index: {}]
  %s6 = inlined_call_operand.vmem [shape: f32[32,32], index: 6, kind: input, shape index: {}]
  %s7 = inlined_call_operand.vmem [shape: f32[8,32], index: 7, kind: input, shape index: {}]
  %s8 = inlined_call_operand.vmem [shape: f32[32,8], index: 8, kind: input, shape index: {}]
  %s9 = inlined_call_operand.<no memory space> [shape: f32[1], index: 9, kind: input, shape index: {}]
  %s10 = inlined_call_operand.vmem [shape: f32[32,128], index: 10, kind: output, shape index: {}]
  %s11 = sld [smem:[#allocation0]]
  $region50: #{cab_forward.1} parent=0
    _
  %s13 = ssub.s32 1, %s11
  %s14 = scalar_select 0, %s13, %s11
  %15 = sst [smem:[#allocation2]] %s9
  // Predicated region
  $region2: #{cab_forward.1} parent=0 // pred_check
    _
  $region3: #{cab_forward.1} parent=0 // pred_check_branch
    %17 = sbr.rel (0) target = $region5
  $region4: #{cab_forward.1} parent=0 // pred_region
    _
  $region5: #{cab_forward.1} parent=0 // pred_fallthru
    _
  // Predicated region
  $region6: #{cab_forward.1} parent=0 // pred_check
    _
  $region7: #{cab_forward.1} parent=0 // pred_check_branch
    %19 = sbr.rel (0) target = $region9
  $region8: #{cab_forward.1} parent=0 // pred_region
    _
  $region9: #{cab_forward.1} parent=0 // pred_fallthru
    _
  // Predicated region
  $region10: #{cab_forward.1} parent=0 // pred_check
    _
  $region11: #{cab_forward.1} parent=0 // pred_check_branch
    %21 = sbr.rel (0) target = $region13
  $region12: #{cab_forward.1} parent=0 // pred_region
    _
  $region13: #{cab_forward.1} parent=0 // pred_fallthru
    _
  // Predicated region
  $region14: #{cab_forward.1} parent=0 // pred_check
    _
  $region15: #{cab_forward.1} parent=0 // pred_check_branch
    %23 = sbr.rel (0) target = $region17
  $region16: #{cab_forward.1} parent=0 // pred_region
    _
  $region17: #{cab_forward.1} parent=0 // pred_fallthru
    _
  // Predicated region
  $region18: #{cab_forward.1} parent=0 // pred_check
    _
  $region19: #{cab_forward.1} parent=0 // pred_check_branch
    %25 = sbr.rel (0) target = $region21
  $region20: #{cab_forward.1} parent=0 // pred_region
    _
  $region21: #{cab_forward.1} parent=0 // pred_fallthru
    _
  // Predicated region
  $region22: #{cab_forward.1} parent=0 // pred_check
    _
  $region23: #{cab_forward.1} parent=0 // pred_check_branch
    %27 = sbr.rel (0) target = $region25
  $region24: #{cab_forward.1} parent=0 // pred_region
    _
  $region25: #{cab_forward.1} parent=0 // pred_fallthru
    _
  // Predicated region
  $region26: #{cab_forward.1} parent=0 // pred_check
    _
  $region27: #{cab_forward.1} parent=0 // pred_check_branch
    %29 = sbr.rel (0) target = $region29
  $region28: #{cab_forward.1} parent=0 // pred_region
    _
  $region29: #{cab_forward.1} parent=0 // pred_fallthru
    _
  // Predicated region
  $region30: #{cab_forward.1} parent=0 // pred_check
    _
  $region31: #{cab_forward.1} parent=0 // pred_check_branch
    %31 = sbr.rel (0) target = $region33
  $region32: #{cab_forward.1} parent=0 // pred_region
    _
  $region33: #{cab_forward.1} parent=0 // pred_fallthru
    _
  // Predicated region
  $region34: #{cab_forward.1} parent=0 // pred_check
    _
  $region35: #{cab_forward.1} parent=0 // pred_check_branch
    %33 = sbr.rel (0) target = $region37
  $region36: #{cab_forward.1} parent=0 // pred_region
    _
  $region37: #{cab_forward.1} parent=0 // pred_fallthru
    _
  // Predicated region
  $region38: #{cab_forward.1} parent=0 // pred_check
    _
  $region39: #{cab_forward.1} parent=0 // pred_check_branch
    %35 = sbr.rel (0) target = $region41
  $region40: #{cab_forward.1} parent=0 // pred_region
    _
  $region41: #{cab_forward.1} parent=0 // pred_fallthru
    _
  %v36 = vld [vmem:[%s0] sm:$0xff]
  %v37 = vld [vmem:[%s0 + $0x8] sm:$0xff]
  %v38 = vld [vmem:[%s0 + $0x10] sm:$0xff]
  %v39 = vld [vmem:[%s0 + $0x18] sm:$0xff]
  %s40 = sld [smem:[#allocation2]]
  %v41 = vld [vmem:[%s5] sm:$0xff]
  %v42 = vld [vmem:[%s5 + $0x8] sm:$0xff]
  %v43 = vld [vmem:[%s5 + $0x10] sm:$0xff]
  %v44 = vld [vmem:[%s5 + $0x18] sm:$0xff]
  %v45 = vld [vmem:[%s6] sm:$0xff]
  %v46 = vld [vmem:[%s6 + $0x8] sm:$0xff]
  %v47 = vld [vmem:[%s6 + $0x10] sm:$0xff]
  %v48 = vld [vmem:[%s6 + $0x18] sm:$0xff]
  %vm49 = vcmask 261120
  %v51 = vsel %vm49, %v41, 0
  %v54 = vsel %vm49, %v42, 0
  %v57 = vsel %vm49, %v43, 0
  %v60 = vsel %vm49, %v44, 0
  %62 = vmatpush.msra.mxu0 0.0
  %63 = vmatpush.msra.mxu0 0.0
  %64 = vmatpush.msra.mxu0 0.0
  %65 = vmatpush.msra.mxu0 0.0
  %66 = vmatpush.msra.mxu0 0.0
  %67 = vmatpush.msra.mxu0 0.0
  %68 = vmatpush.msra.mxu0 0.0
  %69 = vmatpush.msra.mxu0 0.0
  %70 = vmatpush.msra.mxu0 0.0
  %71 = vmatpush.msra.mxu0 0.0
  %72 = vmatpush.msra.mxu0 0.0
  %73 = vmatpush.msra.mxu0 0.0
  %74 = vmatpush.msra.mxu0 %v39
  %75 = vmatpush.msra.mxu0 %v38
  %76 = vmatpush.msra.mxu0 %v37
  %77 = vmatpush.msra.mxu0 %v36
  %78 = vmatmul.f32.gmra.mxu0 %v51
  %v79 = vpop.f32.mrf.mxu0
  %v80 = vadd.f32 0.0, %v79
  %81 = vmatmul.f32.gmra.mxu0 %v54
  %v82 = vpop.f32.mrf.mxu0
  %v83 = vadd.f32 0.0, %v82
  %84 = vmatmul.f32.gmra.mxu0 %v57
  %v85 = vpop.f32.mrf.mxu0
  %v86 = vadd.f32 0.0, %v85
  %87 = vmatmul.f32.gmra.mxu0 %v60
  %v88 = vpop.f32.mrf.mxu0
  %v89 = vadd.f32 0.0, %v88
  %90 = vdwg.mxu0
  %v92 = vsel %vm49, %v45, 0
  %v95 = vsel %vm49, %v46, 0
  %v98 = vsel %vm49, %v47, 0
  %v101 = vsel %vm49, %v48, 0
  %103 = vmatpush.msra.mxu0 0.0
  %104 = vmatpush.msra.mxu0 0.0
  %105 = vmatpush.msra.mxu0 0.0
  %106 = vmatpush.msra.mxu0 0.0
  %107 = vmatpush.msra.mxu0 0.0
  %108 = vmatpush.msra.mxu0 0.0
  %109 = vmatpush.msra.mxu0 0.0
  %110 = vmatpush.msra.mxu0 0.0
  %111 = vmatpush.msra.mxu0 0.0
  %112 = vmatpush.msra.mxu0 0.0
  %113 = vmatpush.msra.mxu0 0.0
  %114 = vmatpush.msra.mxu0 0.0
  %115 = vmatpush.msra.mxu0 %v39
  %116 = vmatpush.msra.mxu0 %v38
  %117 = vmatpush.msra.mxu0 %v37
  %118 = vmatpush.msra.mxu0 %v36
  %119 = vmatmul.f32.gmra.mxu0 %v92
  %v120 = vpop.f32.mrf.mxu0
  %v121 = vadd.f32 0.0, %v120
  %122 = vmatmul.f32.gmra.mxu0 %v95
  %v123 = vpop.f32.mrf.mxu0
  %v124 = vadd.f32 0.0, %v123
  %125 = vmatmul.f32.gmra.mxu0 %v98
  %v126 = vpop.f32.mrf.mxu0
  %v127 = vadd.f32 0.0, %v126
  %128 = vmatmul.f32.gmra.mxu0 %v101
  %v129 = vpop.f32.mrf.mxu0
  %v130 = vadd.f32 0.0, %v129
  %131 = vdwg.mxu0
  %v132 = vld [vmem:[%s1] sm:$0xff]
  %v133 = vld [vmem:[%s1 + $0x8] sm:$0xff]
  %v134 = vld [vmem:[%s1 + $0x10] sm:$0xff]
  %v135 = vld [vmem:[%s1 + $0x18] sm:$0xff]
  %v136 = vld [vmem:[%s1 + $0x20] sm:$0xff]
  %v137 = vld [vmem:[%s1 + $0x28] sm:$0xff]
  %v138 = vld [vmem:[%s1 + $0x30] sm:$0xff]
  %v139 = vld [vmem:[%s1 + $0x38] sm:$0xff]
  %v140 = vld [vmem:[%s1 + $0x40] sm:$0xff]
  %v141 = vld [vmem:[%s1 + $0x48] sm:$0xff]
  %v142 = vld [vmem:[%s1 + $0x50] sm:$0xff]
  %v143 = vld [vmem:[%s1 + $0x58] sm:$0xff]
  %v144 = vld [vmem:[%s1 + $0x60] sm:$0xff]
  %v145 = vld [vmem:[%s1 + $0x68] sm:$0xff]
  %v146 = vld [vmem:[%s1 + $0x70] sm:$0xff]
  %v147 = vld [vmem:[%s1 + $0x78] sm:$0xff]
  %v148 = vld [vmem:[%s1 + $0x80] sm:$0xff]
  %v149 = vld [vmem:[%s1 + $0x88] sm:$0xff]
  %v150 = vld [vmem:[%s1 + $0x90] sm:$0xff]
  %v151 = vld [vmem:[%s1 + $0x98] sm:$0xff]
  %v152 = vld [vmem:[%s1 + $0xa0] sm:$0xff]
  %v153 = vld [vmem:[%s1 + $0xa8] sm:$0xff]
  %v154 = vld [vmem:[%s1 + $0xb0] sm:$0xff]
  %v155 = vld [vmem:[%s1 + $0xb8] sm:$0xff]
  %v156 = vld [vmem:[%s1 + $0xc0] sm:$0xff]
  %v157 = vld [vmem:[%s1 + $0xc8] sm:$0xff]
  %v158 = vld [vmem:[%s1 + $0xd0] sm:$0xff]
  %v159 = vld [vmem:[%s1 + $0xd8] sm:$0xff]
  %v160 = vld [vmem:[%s1 + $0xe0] sm:$0xff]
  %v161 = vld [vmem:[%s1 + $0xe8] sm:$0xff]
  %v162 = vld [vmem:[%s1 + $0xf0] sm:$0xff]
  %v163 = vld [vmem:[%s1 + $0xf8] sm:$0xff]
  %164 = vmatpush.msra.mxu0 %v163
  %165 = vmatpush.msra.mxu0 %v162
  %166 = vmatpush.msra.mxu0 %v161
  %167 = vmatpush.msra.mxu0 %v160
  %168 = vmatpush.msra.mxu0 %v159
  %169 = vmatpush.msra.mxu0 %v158
  %170 = vmatpush.msra.mxu0 %v157
  %171 = vmatpush.msra.mxu0 %v156
  %172 = vmatpush.msra.mxu0 %v155
  %173 = vmatpush.msra.mxu0 %v154
  %174 = vmatpush.msra.mxu0 %v153
  %175 = vmatpush.msra.mxu0 %v152
  %176 = vmatpush.msra.mxu0 %v151
  %177 = vmatpush.msra.mxu0 %v150
  %178 = vmatpush.msra.mxu0 %v149
  %179 = vmatpush.msra.mxu0 %v148
  %180 = vmatmul.f32.gmra.mxu0 %v36
  %v181 = vpop.f32.mrf.mxu0
  %v182 = vadd.f32 0.0, %v181
  %183 = vmatmul.f32.gmra.mxu0 %v37
  %v184 = vpop.f32.mrf.mxu0
  %v185 = vadd.f32 0.0, %v184
  %186 = vmatmul.f32.gmra.mxu0 %v38
  %v187 = vpop.f32.mrf.mxu0
  %v188 = vadd.f32 0.0, %v187
  %189 = vmatmul.f32.gmra.mxu0 %v39
  %v190 = vpop.f32.mrf.mxu0
  %v191 = vadd.f32 0.0, %v190
  %192 = vdwg.mxu0
  %193 = vmatpush.msra.mxu0 %v147
  %194 = vmatpush.msra.mxu0 %v146
  %195 = vmatpush.msra.mxu0 %v145
  %196 = vmatpush.msra.mxu0 %v144
  %197 = vmatpush.msra.mxu0 %v143
  %198 = vmatpush.msra.mxu0 %v142
  %199 = vmatpush.msra.mxu0 %v141
  %200 = vmatpush.msra.mxu0 %v140
  %201 = vmatpush.msra.mxu0 %v139
  %202 = vmatpush.msra.mxu0 %v138
  %203 = vmatpush.msra.mxu0 %v137
  %204 = vmatpush.msra.mxu0 %v136
  %205 = vmatpush.msra.mxu0 %v135
  %206 = vmatpush.msra.mxu0 %v134
  %207 = vmatpush.msra.mxu0 %v133
  %208 = vmatpush.msra.mxu0 %v132
  %209 = vmatmul.f32.gmra.mxu0 %v80
  %v210 = vpop.f32.mrf.mxu0
  %v211 = vadd.f32 %v182, %v210
  %212 = vmatmul.f32.gmra.mxu0 %v83
  %v213 = vpop.f32.mrf.mxu0
  %v214 = vadd.f32 %v185, %v213
  %215 = vmatmul.f32.gmra.mxu0 %v86
  %v216 = vpop.f32.mrf.mxu0
  %v217 = vadd.f32 %v188, %v216
  %218 = vmatmul.f32.gmra.mxu0 %v89
  %v219 = vpop.f32.mrf.mxu0
  %v220 = vadd.f32 %v191, %v219
  %221 = vdwg.mxu0
  %v222 = vld [vmem:[%s1 + $0x100] sm:$0xff]
  %v223 = vld [vmem:[%s1 + $0x108] sm:$0xff]
  %v224 = vld [vmem:[%s1 + $0x110] sm:$0xff]
  %v225 = vld [vmem:[%s1 + $0x118] sm:$0xff]
  %v226 = vld [vmem:[%s1 + $0x120] sm:$0xff]
  %v227 = vld [vmem:[%s1 + $0x128] sm:$0xff]
  %v228 = vld [vmem:[%s1 + $0x130] sm:$0xff]
  %v229 = vld [vmem:[%s1 + $0x138] sm:$0xff]
  %v230 = vld [vmem:[%s1 + $0x140] sm:$0xff]
  %v231 = vld [vmem:[%s1 + $0x148] sm:$0xff]
  %v232 = vld [vmem:[%s1 + $0x150] sm:$0xff]
  %v233 = vld [vmem:[%s1 + $0x158] sm:$0xff]
  %v234 = vld [vmem:[%s1 + $0x160] sm:$0xff]
  %v235 = vld [vmem:[%s1 + $0x168] sm:$0xff]
  %v236 = vld [vmem:[%s1 + $0x170] sm:$0xff]
  %v237 = vld [vmem:[%s1 + $0x178] sm:$0xff]
  %238 = vmatpush.msra.mxu0 %v237
  %239 = vmatpush.msra.mxu0 %v236
  %240 = vmatpush.msra.mxu0 %v235
  %241 = vmatpush.msra.mxu0 %v234
  %242 = vmatpush.msra.mxu0 %v233
  %243 = vmatpush.msra.mxu0 %v232
  %244 = vmatpush.msra.mxu0 %v231
  %245 = vmatpush.msra.mxu0 %v230
  %246 = vmatpush.msra.mxu0 %v229
  %247 = vmatpush.msra.mxu0 %v228
  %248 = vmatpush.msra.mxu0 %v227
  %249 = vmatpush.msra.mxu0 %v226
  %250 = vmatpush.msra.mxu0 %v225
  %251 = vmatpush.msra.mxu0 %v224
  %252 = vmatpush.msra.mxu0 %v223
  %253 = vmatpush.msra.mxu0 %v222
  %254 = vmatmul.f32.gmra.mxu0 %v121
  %v255 = vpop.f32.mrf.mxu0
  %v256 = vadd.f32 0.0, %v255
  %257 = vmatmul.f32.gmra.mxu0 %v124
  %v258 = vpop.f32.mrf.mxu0
  %v259 = vadd.f32 0.0, %v258
  %260 = vmatmul.f32.gmra.mxu0 %v127
  %v261 = vpop.f32.mrf.mxu0
  %v262 = vadd.f32 0.0, %v261
  %263 = vmatmul.f32.gmra.mxu0 %v130
  %v264 = vpop.f32.mrf.mxu0
  %v265 = vadd.f32 0.0, %v264
  %266 = vdwg.mxu0
  %v267 = vadd.f32 %v211, %v256
  %v268 = vadd.f32 %v214, %v259
  %v269 = vadd.f32 %v217, %v262
  %v270 = vadd.f32 %v220, %v265
  %vm271 = vcmp.gt.f32.partialorder %v267, 0.0
  %vm272 = vcmp.gt.f32.partialorder %v268, 0.0
  %vm273 = vcmp.gt.f32.partialorder %v269, 0.0
  %vm274 = vcmp.gt.f32.partialorder %v270, 0.0
  %v275 = vstv %s40
  %v276 = vmul.f32 %v275, %v267
  %v277 = vmul.f32 %v275, %v268
  %v278 = vmul.f32 %v275, %v269
  %v279 = vmul.f32 %v275, %v270
  %v280 = vsel %vm271, %v267, %v276
  %v281 = vsel %vm272, %v268, %v277
  %v282 = vsel %vm273, %v269, %v278
  %v283 = vsel %vm274, %v270, %v279
  %284 = vmatpush.msra.mxu0 0.0
  %285 = vmatpush.msra.mxu0 0.0
  %286 = vmatpush.msra.mxu0 0.0
  %287 = vmatpush.msra.mxu0 0.0
  %288 = vmatpush.msra.mxu0 0.0
  %289 = vmatpush.msra.mxu0 0.0
  %290 = vmatpush.msra.mxu0 0.0
  %291 = vmatpush.msra.mxu0 0.0
  %292 = vmatpush.msra.mxu0 0.0
  %293 = vmatpush.msra.mxu0 0.0
  %294 = vmatpush.msra.mxu0 0.0
  %295 = vmatpush.msra.mxu0 0.0
  %296 = vmatpush.msra.mxu0 %v283
  %297 = vmatpush.msra.mxu0 %v282
  %298 = vmatpush.msra.mxu0 %v281
  %299 = vmatpush.msra.mxu0 %v280
  %300 = vmatmul.f32.gmra.mxu0 %v51
  %v301 = vpop.f32.mrf.mxu0
  %v302 = vadd.f32 0.0, %v301
  %303 = vmatmul.f32.gmra.mxu0 %v54
  %v304 = vpop.f32.mrf.mxu0
  %v305 = vadd.f32 0.0, %v304
  %306 = vmatmul.f32.gmra.mxu0 %v57
  %v307 = vpop.f32.mrf.mxu0
  %v308 = vadd.f32 0.0, %v307
  %309 = vmatmul.f32.gmra.mxu0 %v60
  %v310 = vpop.f32.mrf.mxu0
  %v311 = vadd.f32 0.0, %v310
  %312 = vdwg.mxu0
  %313 = vmatpush.msra.mxu0 0.0
  %314 = vmatpush.msra.mxu0 0.0
  %315 = vmatpush.msra.mxu0 0.0
  %316 = vmatpush.msra.mxu0 0.0
  %317 = vmatpush.msra.mxu0 0.0
  %318 = vmatpush.msra.mxu0 0.0
  %319 = vmatpush.msra.mxu0 0.0
  %320 = vmatpush.msra.mxu0 0.0
  %321 = vmatpush.msra.mxu0 0.0
  %322 = vmatpush.msra.mxu0 0.0
  %323 = vmatpush.msra.mxu0 0.0
  %324 = vmatpush.msra.mxu0 0.0
  %325 = vmatpush.msra.mxu0 %v283
  %326 = vmatpush.msra.mxu0 %v282
  %327 = vmatpush.msra.mxu0 %v281
  %328 = vmatpush.msra.mxu0 %v280
  %329 = vmatmul.f32.gmra.mxu0 %v92
  %v330 = vpop.f32.mrf.mxu0
  %v331 = vadd.f32 0.0, %v330
  %332 = vmatmul.f32.gmra.mxu0 %v95
  %v333 = vpop.f32.mrf.mxu0
  %v334 = vadd.f32 0.0, %v333
  %335 = vmatmul.f32.gmra.mxu0 %v98
  %v336 = vpop.f32.mrf.mxu0
  %v337 = vadd.f32 0.0, %v336
  %338 = vmatmul.f32.gmra.mxu0 %v101
  %v339 = vpop.f32.mrf.mxu0
  %v340 = vadd.f32 0.0, %v339
  %341 = vdwg.mxu0
  %v342 = vld [vmem:[%s2] sm:$0xff]
  %v343 = vld [vmem:[%s2 + $0x8] sm:$0xff]
  %v344 = vld [vmem:[%s2 + $0x10] sm:$0xff]
  %v345 = vld [vmem:[%s2 + $0x18] sm:$0xff]
  %v346 = vld [vmem:[%s2 + $0x20] sm:$0xff]
  %v347 = vld [vmem:[%s2 + $0x28] sm:$0xff]
  %v348 = vld [vmem:[%s2 + $0x30] sm:$0xff]
  %v349 = vld [vmem:[%s2 + $0x38] sm:$0xff]
  %v350 = vld [vmem:[%s2 + $0x40] sm:$0xff]
  %v351 = vld [vmem:[%s2 + $0x48] sm:$0xff]
  %v352 = vld [vmem:[%s2 + $0x50] sm:$0xff]
  %v353 = vld [vmem:[%s2 + $0x58] sm:$0xff]
  %v354 = vld [vmem:[%s2 + $0x60] sm:$0xff]
  %v355 = vld [vmem:[%s2 + $0x68] sm:$0xff]
  %v356 = vld [vmem:[%s2 + $0x70] sm:$0xff]
  %v357 = vld [vmem:[%s2 + $0x78] sm:$0xff]
  %v358 = vld [vmem:[%s2 + $0x80] sm:$0xff]
  %v359 = vld [vmem:[%s2 + $0x88] sm:$0xff]
  %v360 = vld [vmem:[%s2 + $0x90] sm:$0xff]
  %v361 = vld [vmem:[%s2 + $0x98] sm:$0xff]
  %v362 = vld [vmem:[%s2 + $0xa0] sm:$0xff]
  %v363 = vld [vmem:[%s2 + $0xa8] sm:$0xff]
  %v364 = vld [vmem:[%s2 + $0xb0] sm:$0xff]
  %v365 = vld [vmem:[%s2 + $0xb8] sm:$0xff]
  %v366 = vld [vmem:[%s2 + $0xc0] sm:$0xff]
  %v367 = vld [vmem:[%s2 + $0xc8] sm:$0xff]
  %v368 = vld [vmem:[%s2 + $0xd0] sm:$0xff]
  %v369 = vld [vmem:[%s2 + $0xd8] sm:$0xff]
  %v370 = vld [vmem:[%s2 + $0xe0] sm:$0xff]
  %v371 = vld [vmem:[%s2 + $0xe8] sm:$0xff]
  %v372 = vld [vmem:[%s2 + $0xf0] sm:$0xff]
  %v373 = vld [vmem:[%s2 + $0xf8] sm:$0xff]
  %374 = vmatpush.msra.mxu0 %v373
  %375 = vmatpush.msra.mxu0 %v372
  %376 = vmatpush.msra.mxu0 %v371
  %377 = vmatpush.msra.mxu0 %v370
  %378 = vmatpush.msra.mxu0 %v369
  %379 = vmatpush.msra.mxu0 %v368
  %380 = vmatpush.msra.mxu0 %v367
  %381 = vmatpush.msra.mxu0 %v366
  %382 = vmatpush.msra.mxu0 %v365
  %383 = vmatpush.msra.mxu0 %v364
  %384 = vmatpush.msra.mxu0 %v363
  %385 = vmatpush.msra.mxu0 %v362
  %386 = vmatpush.msra.mxu0 %v361
  %387 = vmatpush.msra.mxu0 %v360
  %388 = vmatpush.msra.mxu0 %v359
  %389 = vmatpush.msra.mxu0 %v358
  %390 = vmatmul.f32.gmra.mxu0 %v280
  %v391 = vpop.f32.mrf.mxu0
  %v392 = vadd.f32 0.0, %v391
  %393 = vmatmul.f32.gmra.mxu0 %v281
  %v394 = vpop.f32.mrf.mxu0
  %v395 = vadd.f32 0.0, %v394
  %396 = vmatmul.f32.gmra.mxu0 %v282
  %v397 = vpop.f32.mrf.mxu0
  %v398 = vadd.f32 0.0, %v397
  %399 = vmatmul.f32.gmra.mxu0 %v283
  %v400 = vpop.f32.mrf.mxu0
  %v401 = vadd.f32 0.0, %v400
  %402 = vdwg.mxu0
  %403 = vmatpush.msra.mxu0 %v357
  %404 = vmatpush.msra.mxu0 %v356
  %405 = vmatpush.msra.mxu0 %v355
  %406 = vmatpush.msra.mxu0 %v354
  %407 = vmatpush.msra.mxu0 %v353
  %408 = vmatpush.msra.mxu0 %v352
  %409 = vmatpush.msra.mxu0 %v351
  %410 = vmatpush.msra.mxu0 %v350
  %411 = vmatpush.msra.mxu0 %v349
  %412 = vmatpush.msra.mxu0 %v348
  %413 = vmatpush.msra.mxu0 %v347
  %414 = vmatpush.msra.mxu0 %v346
  %415 = vmatpush.msra.mxu0 %v345
  %416 = vmatpush.msra.mxu0 %v344
  %417 = vmatpush.msra.mxu0 %v343
  %418 = vmatpush.msra.mxu0 %v342
  %419 = vmatmul.f32.gmra.mxu0 %v302
  %v420 = vpop.f32.mrf.mxu0
  %v421 = vadd.f32 %v392, %v420
  %422 = vmatmul.f32.gmra.mxu0 %v305
  %v423 = vpop.f32.mrf.mxu0
  %v424 = vadd.f32 %v395, %v423
  %425 = vmatmul.f32.gmra.mxu0 %v308
  %v426 = vpop.f32.mrf.mxu0
  %v427 = vadd.f32 %v398, %v426
  %428 = vmatmul.f32.gmra.mxu0 %v311
  %v429 = vpop.f32.mrf.mxu0
  %v430 = vadd.f32 %v401, %v429
  %431 = vdwg.mxu0
  %v432 = vld [vmem:[%s2 + $0x100] sm:$0xff]
  %v433 = vld [vmem:[%s2 + $0x108] sm:$0xff]
  %v434 = vld [vmem:[%s2 + $0x110] sm:$0xff]
  %v435 = vld [vmem:[%s2 + $0x118] sm:$0xff]
  %v436 = vld [vmem:[%s2 + $0x120] sm:$0xff]
  %v437 = vld [vmem:[%s2 + $0x128] sm:$0xff]
  %v438 = vld [vmem:[%s2 + $0x130] sm:$0xff]
  %v439 = vld [vmem:[%s2 + $0x138] sm:$0xff]
  %v440 = vld [vmem:[%s2 + $0x140] sm:$0xff]
  %v441 = vld [vmem:[%s2 + $0x148] sm:$0xff]
  %v442 = vld [vmem:[%s2 + $0x150] sm:$0xff]
  %v443 = vld [vmem:[%s2 + $0x158] sm:$0xff]
  %v444 = vld [vmem:[%s2 + $0x160] sm:$0xff]
  %v445 = vld [vmem:[%s2 + $0x168] sm:$0xff]
  %v446 = vld [vmem:[%s2 + $0x170] sm:$0xff]
  %v447 = vld [vmem:[%s2 + $0x178] sm:$0xff]
  %448 = vmatpush.msra.mxu0 %v447
  %449 = vmatpush.msra.mxu0 %v446
  %450 = vmatpush.msra.mxu0 %v445
  %451 = vmatpush.msra.mxu0 %v444
  %452 = vmatpush.msra.mxu0 %v443
  %453 = vmatpush.msra.mxu0 %v442
  %454 = vmatpush.msra.mxu0 %v441
  %455 = vmatpush.msra.mxu0 %v440
  %456 = vmatpush.msra.mxu0 %v439
  %457 = vmatpush.msra.mxu0 %v438
  %458 = vmatpush.msra.mxu0 %v437
  %459 = vmatpush.msra.mxu0 %v436
  %460 = vmatpush.msra.mxu0 %v435
  %461 = vmatpush.msra.mxu0 %v434
  %462 = vmatpush.msra.mxu0 %v433
  %463 = vmatpush.msra.mxu0 %v432
  %464 = vmatmul.f32.gmra.mxu0 %v331
  %v465 = vpop.f32.mrf.mxu0
  %v466 = vadd.f32 0.0, %v465
  %467 = vmatmul.f32.gmra.mxu0 %v334
  %v468 = vpop.f32.mrf.mxu0
  %v469 = vadd.f32 0.0, %v468
  %470 = vmatmul.f32.gmra.mxu0 %v337
  %v471 = vpop.f32.mrf.mxu0
  %v472 = vadd.f32 0.0, %v471
  %473 = vmatmul.f32.gmra.mxu0 %v340
  %v474 = vpop.f32.mrf.mxu0
  %v475 = vadd.f32 0.0, %v474
  %476 = vdwg.mxu0
  %v477 = vadd.f32 %v421, %v466
  %v478 = vadd.f32 %v424, %v469
  %v479 = vadd.f32 %v427, %v472
  %v480 = vadd.f32 %v430, %v475
  %v481 = vld [vmem:[%s7] sm:$0xff]
  %v483 = vsel %vm49, %v481, 0
  %485 = vmatpush.msra.mxu0 0.0
  %486 = vmatpush.msra.mxu0 0.0
  %487 = vmatpush.msra.mxu0 0.0
  %488 = vmatpush.msra.mxu0 0.0
  %489 = vmatpush.msra.mxu0 0.0
  %490 = vmatpush.msra.mxu0 0.0
  %491 = vmatpush.msra.mxu0 0.0
  %492 = vmatpush.msra.mxu0 0.0
  %493 = vmatpush.msra.mxu0 0.0
  %494 = vmatpush.msra.mxu0 0.0
  %495 = vmatpush.msra.mxu0 0.0
  %496 = vmatpush.msra.mxu0 0.0
  %497 = vmatpush.msra.mxu0 %v480
  %498 = vmatpush.msra.mxu0 %v479
  %499 = vmatpush.msra.mxu0 %v478
  %500 = vmatpush.msra.mxu0 %v477
  %501 = vmatmul.f32.gmra.mxu0 %v483
  %v502 = vpop.f32.mrf.mxu0
  %v503 = vadd.f32 0.0, %v502
  %504 = vdwg.mxu0
  %v505 = vld [vmem:[%s3] sm:$0xff]
  %v506 = vld [vmem:[%s3 + $0x8] sm:$0xff]
  %v507 = vld [vmem:[%s3 + $0x10] sm:$0xff]
  %v508 = vld [vmem:[%s3 + $0x18] sm:$0xff]
  %v509 = vld [vmem:[%s3 + $0x20] sm:$0xff]
  %v510 = vld [vmem:[%s3 + $0x28] sm:$0xff]
  %v511 = vld [vmem:[%s3 + $0x30] sm:$0xff]
  %v512 = vld [vmem:[%s3 + $0x38] sm:$0xff]
  %v513 = vld [vmem:[%s3 + $0x40] sm:$0xff]
  %v514 = vld [vmem:[%s3 + $0x48] sm:$0xff]
  %v515 = vld [vmem:[%s3 + $0x50] sm:$0xff]
  %v516 = vld [vmem:[%s3 + $0x58] sm:$0xff]
  %v517 = vld [vmem:[%s3 + $0x60] sm:$0xff]
  %v518 = vld [vmem:[%s3 + $0x68] sm:$0xff]
  %v519 = vld [vmem:[%s3 + $0x70] sm:$0xff]
  %v520 = vld [vmem:[%s3 + $0x78] sm:$0xff]
  %521 = vmatpush.msra.mxu0 %v520
  %522 = vmatpush.msra.mxu0 %v519
  %523 = vmatpush.msra.mxu0 %v518
  %524 = vmatpush.msra.mxu0 %v517
  %525 = vmatpush.msra.mxu0 %v516
  %526 = vmatpush.msra.mxu0 %v515
  %527 = vmatpush.msra.mxu0 %v514
  %528 = vmatpush.msra.mxu0 %v513
  %529 = vmatpush.msra.mxu0 %v512
  %530 = vmatpush.msra.mxu0 %v511
  %531 = vmatpush.msra.mxu0 %v510
  %532 = vmatpush.msra.mxu0 %v509
  %533 = vmatpush.msra.mxu0 %v508
  %534 = vmatpush.msra.mxu0 %v507
  %535 = vmatpush.msra.mxu0 %v506
  %536 = vmatpush.msra.mxu0 %v505
  %537 = vmatmul.f32.gmra.mxu0 %v503
  %v538 = vpop.f32.mrf.mxu0
  %v539 = vadd.f32 0.0, %v538
  %540 = vdwg.mxu0
  %v541 = vmax.f32 %v539, 0.0
  %v542 = vld [vmem:[%s4] sm:$0xff]
  %v543 = vld [vmem:[%s4 + $0x8] sm:$0xff]
  %v544 = vld [vmem:[%s4 + $0x10] sm:$0xff]
  %v545 = vld [vmem:[%s4 + $0x18] sm:$0xff]
  %v546 = vld [vmem:[%s4 + $0x20] sm:$0xff]
  %v547 = vld [vmem:[%s4 + $0x28] sm:$0xff]
  %v548 = vld [vmem:[%s4 + $0x30] sm:$0xff]
  %v549 = vld [vmem:[%s4 + $0x38] sm:$0xff]
  %v550 = vld [vmem:[%s4 + $0x40] sm:$0xff]
  %v551 = vld [vmem:[%s4 + $0x48] sm:$0xff]
  %v552 = vld [vmem:[%s4 + $0x50] sm:$0xff]
  %v553 = vld [vmem:[%s4 + $0x58] sm:$0xff]
  %v554 = vld [vmem:[%s4 + $0x60] sm:$0xff]
  %v555 = vld [vmem:[%s4 + $0x68] sm:$0xff]
  %v556 = vld [vmem:[%s4 + $0x70] sm:$0xff]
  %v557 = vld [vmem:[%s4 + $0x78] sm:$0xff]
  %558 = vmatpush.msra.mxu0 %v557
  %559 = vmatpush.msra.mxu0 %v556
  %560 = vmatpush.msra.mxu0 %v555
  %561 = vmatpush.msra.mxu0 %v554
  %562 = vmatpush.msra.mxu0 %v553
  %563 = vmatpush.msra.mxu0 %v552
  %564 = vmatpush.msra.mxu0 %v551
  %565 = vmatpush.msra.mxu0 %v550
  %566 = vmatpush.msra.mxu0 %v549
  %567 = vmatpush.msra.mxu0 %v548
  %568 = vmatpush.msra.mxu0 %v547
  %569 = vmatpush.msra.mxu0 %v546
  %570 = vmatpush.msra.mxu0 %v545
  %571 = vmatpush.msra.mxu0 %v544
  %572 = vmatpush.msra.mxu0 %v543
  %573 = vmatpush.msra.mxu0 %v542
  %574 = vmatmul.f32.gmra.mxu0 %v541
  %v575 = vpop.f32.mrf.mxu0
  %v576 = vadd.f32 0.0, %v575
  %577 = vdwg.mxu0
  %v578 = vxor.u32 %v576, 2147483648
  %v579 = vmul.f32 %v578, 1.442695
  %v580 = vpow.pop %v579
  %v581 = vadd.f32 %v580, 1.0
  %v582 = vrcp.pop %v581
  %v583 = vmul.f32 %v581, %v582
  %v584 = vsub.f32 1.0, %v583
  %v585 = vmul.f32 %v582, %v584
  %v586 = vadd.f32 %v582, %v585
  %vm587 = vweird.f32 %v581
  %vm588 = vweird.f32 %v582
  %vm589 = vmor %vm587, %vm588
  %v590 = vsel %vm589, %v582, %v586
  %v591 = vand.u32 2147483647, %v581
  %vm592 = vcmp.eq.f32.partialorder %v591, 8.507059e+37
  %v593 = vand.u32 %v581, 2147483648
  %v594 = vor.u32 1.1754944e-38, %v593
  %v595 = vsel %vm592, %v594, %v590
  %v596 = vmul.f32 1.0, %v595
  %v597 = vld [vmem:[%s8] sm:$0xff]
  %v598 = vld [vmem:[%s8 + $0x8] sm:$0xff]
  %v599 = vld [vmem:[%s8 + $0x10] sm:$0xff]
  %v600 = vld [vmem:[%s8 + $0x18] sm:$0xff]
  %vm601 = vcmask 64512
  %v603 = vsel %vm601, %v597, 0
  %v606 = vsel %vm601, %v598, 0
  %v609 = vsel %vm601, %v599, 0
  %v612 = vsel %vm601, %v600, 0
  %614 = vmatpush.msra.mxu0 0.0
  %615 = vmatpush.msra.mxu0 0.0
  %616 = vmatpush.msra.mxu0 0.0
  %617 = vmatpush.msra.mxu0 0.0
  %618 = vmatpush.msra.mxu0 0.0
  %619 = vmatpush.msra.mxu0 0.0
  %620 = vmatpush.msra.mxu0 0.0
  %621 = vmatpush.msra.mxu0 0.0
  %622 = vmatpush.msra.mxu0 0.0
  %623 = vmatpush.msra.mxu0 0.0
  %624 = vmatpush.msra.mxu0 0.0
  %625 = vmatpush.msra.mxu0 0.0
  %626 = vmatpush.msra.mxu0 0.0
  %627 = vmatpush.msra.mxu0 0.0
  %628 = vmatpush.msra.mxu0 0.0
  %629 = vmatpush.msra.mxu0 %v596
  %630 = vmatmul.f32.gmra.mxu0 %v603
  %v631 = vpop.f32.mrf.mxu0
  %v632 = vadd.f32 0.0, %v631
  %633 = vmatmul.f32.gmra.mxu0 %v606
  %v634 = vpop.f32.mrf.mxu0
  %v635 = vadd.f32 0.0, %v634
  %636 = vmatmul.f32.gmra.mxu0 %v609
  %v637 = vpop.f32.mrf.mxu0
  %v638 = vadd.f32 0.0, %v637
  %639 = vmatmul.f32.gmra.mxu0 %v612
  %v640 = vpop.f32.mrf.mxu0
  %v641 = vadd.f32 0.0, %v640
  %642 = vdwg.mxu0
  %v643 = vmul.f32 %v477, %v632
  %v644 = vmul.f32 %v478, %v635
  %v645 = vmul.f32 %v479, %v638
  %v646 = vmul.f32 %v480, %v641
  %v647 = vadd.f32 %v643, %v36
  %v648 = vadd.f32 %v644, %v37
  %v649 = vadd.f32 %v645, %v38
  %v650 = vadd.f32 %v646, %v39
  %651 = vst [vmem:[%s10] sm:$0xff] %v647
  %652 = vst [vmem:[%s10 + $0x8] sm:$0xff] %v648
  %653 = vst [vmem:[%s10 + $0x10] sm:$0xff] %v649
  %654 = vst [vmem:[%s10 + $0x18] sm:$0xff] %v650
  // Predicated region
  $region42: #{cab_forward.1} parent=0 // pred_check
    _
  $region43: #{cab_forward.1} parent=0 // pred_check_branch
    %656 = sbr.rel (0) target = $region45
  $region44: #{cab_forward.1} parent=0 // pred_region
    _
  $region45: #{cab_forward.1} parent=0 // pred_fallthru
    _
  // Predicated region
  $region46: #{cab_forward.1} parent=0 // pred_check
    _
  $region47: #{cab_forward.1} parent=0 // pred_check_branch
    %658 = sbr.rel (0) target = $region49
  $region48: #{cab_forward.1} parent=0 // pred_region
    _
  $region49: #{cab_forward.1} parent=0 // pred_fallthru
    _

</llo_original>
